<compile_context>
chip_gen: v7x
topology: tpu7x:2x2x1
jax: 0.10.0
libtpu: 0.0.40
codegen_flags: <defaults>
</compile_context>

<pallas_src>
import functools

import jax
import jax.numpy as jnp
from jax.experimental import pallas as pl
from jax.experimental.pallas import tpu as pltpu


def _round_up(x, m):
    return (x + m - 1) // m * m


# ---------------------------------------------------------------------------
# Fused Pallas kernel: full GNN_node forward (all GIN layers)
# ---------------------------------------------------------------------------
def gnn_node_kernel(
    h0_ref,      # (Np, Dp)     f32  initial node features (zero padded)
    src_ref,     # (Ep, 1)      i32  edge_index[0]  (gather / source)
    dst_ref,     # (1, Ep)      i32  edge_index[1]  (scatter / dest, -1 = pad)
    ea_ref,      # (Ep, 8)      f32  edge attributes (7 -> 8 padded)
    we_ref,      # (8, L*Dp)    f32  stacked edge-encoder weights
    be_ref,      # (1, L*Dp)    f32  stacked edge-encoder biases
    eps_ref,     # (L,)         f32  GIN eps per layer       (SMEM)
    w1_ref,      # (L, Dp, Hp)  f32  mlp Linear1 weight, BN1 scale folded in
    t1_ref,      # (L, 1, Hp)   f32  folded bias + shift for Linear1/BN1
    w2_ref,      # (L, Hp, Dp)  f32  mlp Linear2 weight, outer BN scale folded
    t2_ref,      # (L, 1, Dp)   f32  folded bias + shift for Linear2/outer BN
    out_ref,     # (Np, Dp)     f32  final node representation
    ee_scratch,  # (L, Ep, Dp)  f32  VMEM scratch: per-layer edge embeddings
    *,
    num_layers: int,
    d_pad: int,
):
    n_pad = out_ref.shape[0]
    e_pad = ea_ref.shape[0]

    # ---- edge encoder for ALL layers in one MXU matmul: (Ep,8)@(8,L*Dp) ----
    ee_all = jnp.dot(ea_ref[...], we_ref[...],
                     preferred_element_type=jnp.float32) + be_ref[...]
    for l in range(num_layers):                       # static, tiny unroll
        ee_scratch[l] = ee_all[:, l * d_pad:(l + 1) * d_pad]

    # ---- gather / scatter one-hots built in-register from int32 indices ----
    src = src_ref[...]                                # (Ep, 1)
    dst = dst_ref[...]                                # (1, Ep)
    src_oh = (jax.lax.broadcasted_iota(jnp.int32, (e_pad, n_pad), 1)
              == src).astype(jnp.float32)             # (Ep, Np)  x_j gather
    dst_oh = (jax.lax.broadcasted_iota(jnp.int32, (n_pad, e_pad), 0)
              == dst).astype(jnp.float32)             # (Np, Ep)  scatter-add

    def layer_body(l, h):
        ee = ee_scratch[l]                                          # (Ep, Dp)
        # message(x_j, edge_attr) = relu(x[src] + edge_embedding)
        x_j = jnp.dot(src_oh, h, preferred_element_type=jnp.float32)
        msg = jnp.maximum(x_j + ee, 0.0)                            # (Ep, Dp)
        # aggr='add' over destination nodes (padded edges have dst == -1)
        agg = jnp.dot(dst_oh, msg, preferred_element_type=jnp.float32)
        # (1 + eps) * x + aggregated messages
        z = (1.0 + eps_ref[l]) * h + agg                            # (Np, Dp)
        # mlp: Linear(D,2D) -> BN(2D) -> ReLU -> Linear(2D,D) -> outer BN
        h1 = jnp.maximum(
            jnp.dot(z, w1_ref[l], preferred_element_type=jnp.float32)
            + t1_ref[l], 0.0)                                       # (Np, Hp)
        h2 = (jnp.dot(h1, w2_ref[l], preferred_element_type=jnp.float32)
              + t2_ref[l])                                          # (Np, Dp)
        # F.relu for all but the last layer (dropout is identity in eval mode)
        return jnp.where(l < num_layers - 1, jnp.maximum(h2, 0.0), h2)

    out_ref[...] = jax.lax.fori_loop(0, num_layers, layer_body, h0_ref[...])


def gnn_node_pallas(h0, src_col, dst_row, ea, we_all, be_all, eps,
                    w1f, t1f, w2f, t2f, *, num_layers, d_pad):
    n_pad = h0.shape[0]
    e_pad = ea.shape[0]
    kernel = functools.partial(gnn_node_kernel,
                               num_layers=num_layers, d_pad=d_pad)
    vmem = pl.BlockSpec(memory_space=pltpu.MemorySpace.VMEM)
    smem = pl.BlockSpec(memory_space=pltpu.MemorySpace.SMEM)
    return pl.pallas_call(
        kernel,
        out_shape=jax.ShapeDtypeStruct((n_pad, d_pad), jnp.float32),
        in_specs=[vmem, vmem, vmem, vmem, vmem, vmem, smem,
                  vmem, vmem, vmem, vmem],
        out_specs=vmem,
        scratch_shapes=[pltpu.VMEM((num_layers, e_pad, d_pad), jnp.float32)],
    )(h0, src_col, dst_row, ea, we_all, be_all, eps, w1f, t1f, w2f, t2f)


# ---------------------------------------------------------------------------
# Parameter construction (deterministic, PyTorch-style default init)
# ---------------------------------------------------------------------------
def _linear_init(key, fan_in, fan_out):
    kw, kb = jax.random.split(key)
    bound = 1.0 / jnp.sqrt(jnp.float32(fan_in))
    w = jax.random.uniform(kw, (fan_in, fan_out), jnp.float32, -bound, bound)
    b = jax.random.uniform(kb, (fan_out,), jnp.float32, -bound, bound)
    return w, b


def _bn_eval_affine(dim):
    # gamma=1, beta=0, running_mean=0, running_var=1, eps=1e-5 (fresh init)
    gamma = jnp.ones((dim,), jnp.float32)
    beta = jnp.zeros((dim,), jnp.float32)
    mean = jnp.zeros((dim,), jnp.float32)
    var = jnp.ones((dim,), jnp.float32)
    scale = gamma / jnp.sqrt(var + 1e-5)
    shift = beta - mean * scale
    return scale, shift


def make_params(key, num_layer, emb_dim):
    layers = []
    for _ in range(num_layer):
        key, k_e, k_1, k_2 = jax.random.split(key, 4)
        we, be = _linear_init(k_e, 7, emb_dim)                # edge_encoder
        eps = jnp.zeros((), jnp.float32)                      # GIN eps
        w1, b1 = _linear_init(k_1, emb_dim, 2 * emb_dim)      # mlp Linear 1
        s1, t1 = _bn_eval_affine(2 * emb_dim)                 # mlp BN(2D)
        w2, b2 = _linear_init(k_2, 2 * emb_dim, emb_dim)      # mlp Linear 2
        s2, t2 = _bn_eval_affine(emb_dim)                     # outer BN(D)
        layers.append(dict(we=we, be=be, eps=eps, w1=w1, b1=b1, s1=s1, t1=t1,
                           w2=w2, b2=b2, s2=s2, t2=t2))
    return layers


def pack_params(layers, emb_dim):
    """Fold eval-mode BN into the Linears, zero-pad lanes to 128, stack layers."""
    D, H = emb_dim, 2 * emb_dim
    Dp, Hp = _round_up(D, 128), _round_up(H, 128)

    we_all, be_all = [], []
    w1f, t1f, w2f, t2f, eps = [], [], [], [], []
    for p in layers:
        we_all.append(jnp.zeros((8, Dp), jnp.float32).at[:7, :D].set(p["we"]))
        be_all.append(jnp.zeros((1, Dp), jnp.float32).at[0, :D].set(p["be"]))
        # Linear1 + BN1:  (z@w1 + b1)*s1 + t1 == z@(w1*s1) + (b1*s1 + t1)
        w1f.append(jnp.zeros((Dp, Hp), jnp.float32)
                   .at[:D, :H].set(p["w1"] * p["s1"][None, :]))
        t1f.append(jnp.zeros((1, Hp), jnp.float32)
                   .at[0, :H].set(p["b1"] * p["s1"] + p["t1"]))
        # Linear2 + outer BN
        w2f.append(jnp.zeros((Hp, Dp), jnp.float32)
                   .at[:H, :D].set(p["w2"] * p["s2"][None, :]))
        t2f.append(jnp.zeros((1, Dp), jnp.float32)
                   .at[0, :D].set(p["b2"] * p["s2"] + p["t2"]))
        eps.append(p["eps"])

    return dict(
        we_all=jnp.concatenate(we_all, axis=1),   # (8, L*Dp)
        be_all=jnp.concatenate(be_all, axis=1),   # (1, L*Dp)
        eps=jnp.stack(eps),                       # (L,)
        w1f=jnp.stack(w1f), t1f=jnp.stack(t1f),   # (L,Dp,Hp), (L,1,Hp)
        w2f=jnp.stack(w2f), t2f=jnp.stack(t2f),   # (L,Hp,Dp), (L,1,Dp)
        d_pad=Dp,
    )


# ---------------------------------------------------------------------------
# GNN_node forward
# ---------------------------------------------------------------------------
def gnn_node_forward(x_idx, edge_index, edge_attr, node_emb_w, layer_params,
                     emb_dim):
    L = len(layer_params)
    N = x_idx.shape[0]
    E = edge_index.shape[1]
    D = emb_dim
    Np, Ep = _round_up(N, 8), _round_up(E, 8)

    packed = pack_params(layer_params, emb_dim)
    Dp = packed["d_pad"]

    # node_encoder: Embedding(1, emb_dim) lookup (glue; trivial gather)
    h0 = node_emb_w[x_idx].astype(jnp.float32)                       # (N, D)
    h0 = jnp.zeros((Np, Dp), jnp.float32).at[:N, :D].set(h0)

    # int32 edge indices only (no dense one-hots leave the host / HBM).
    # Padded edges: src -> 0 (harmless gather), dst -> -1 (never scattered).
    src = jnp.zeros((Ep,), jnp.int32).at[:E].set(edge_index[0].astype(jnp.int32))
    dst = jnp.full((Ep,), -1, jnp.int32).at[:E].set(edge_index[1].astype(jnp.int32))
    src_col = src.reshape(Ep, 1)
    dst_row = dst.reshape(1, Ep)

    ea = jnp.zeros((Ep, 8), jnp.float32).at[:E, :7].set(
        edge_attr.astype(jnp.float32))

    out = gnn_node_pallas(h0, src_col, dst_row, ea,
                          packed["we_all"], packed["be_all"], packed["eps"],
                          packed["w1f"], packed["t1f"],
                          packed["w2f"], packed["t2f"],
                          num_layers=L, d_pad=Dp)
    return out[:N, :D]


# ---------------------------------------------------------------------------
if __name__ == "__main__":
    N, E, EMB_DIM, NUM_LAYER = 8, 16, 32, 3

    key = jax.random.PRNGKey(0)
    k_emb, k_ea, k_src, k_dst, k_par = jax.random.split(key, 5)

    # batched_data fields
    x_idx = jnp.zeros((N,), jnp.int32)                  # Embedding has 1 row
    edge_attr = jax.random.normal(k_ea, (E, 7), jnp.float32)
    src = jax.random.randint(k_src, (E,), 0, N, dtype=jnp.int32)
    dst = jax.random.randint(k_dst, (E,), 0, N, dtype=jnp.int32)
    edge_index = jnp.stack([src, dst], axis=0)          # (2, E)

    node_emb_w = jax.random.normal(k_emb, (1, EMB_DIM), jnp.float32)
    params = make_params(k_par, NUM_LAYER, EMB_DIM)

    out = gnn_node_forward(x_idx, edge_index, edge_attr, node_emb_w, params,
                           EMB_DIM)
    jax.block_until_ready(out)
    assert out.shape == (N, EMB_DIM) and out.dtype == jnp.float32
    assert bool(jnp.isfinite(out).all())
    print("KERNEL_OK")
</pallas_src>

<mosaic_0001>
module attributes {stable_mosaic.version = 11 : i64} {
  func.func @gnn_node_kernel(%arg0: memref<8x128xf32, #tpu.memory_space<vmem>>, %arg1: memref<16x1xi32, #tpu.memory_space<vmem>>, %arg2: memref<1x16xi32, #tpu.memory_space<vmem>>, %arg3: memref<16x8xf32, #tpu.memory_space<vmem>>, %arg4: memref<8x384xf32, #tpu.memory_space<vmem>>, %arg5: memref<1x384xf32, #tpu.memory_space<vmem>>, %arg6: memref<3xf32, #tpu.memory_space<smem>>, %arg7: memref<3x128x128xf32, #tpu.memory_space<vmem>>, %arg8: memref<3x1x128xf32, #tpu.memory_space<vmem>>, %arg9: memref<3x128x128xf32, #tpu.memory_space<vmem>>, %arg10: memref<3x1x128xf32, #tpu.memory_space<vmem>>, %arg11: memref<8x128xf32, #tpu.memory_space<vmem>>, %arg12: memref<3x16x128xf32, #tpu.memory_space<vmem>>) attributes {dimension_semantics = [], scalar_prefetch = 0 : i64, scratch_operands = 1 : i64, tpu.core_type = #tpu.core_type<tc>} {
    %c0 = arith.constant 0 : index
    %c0_0 = arith.constant 0 : index
    %0 = vector.load %arg3[%c0, %c0_0] : memref<16x8xf32, #tpu.memory_space<vmem>>, vector<16x8xf32>
    %c0_1 = arith.constant 0 : index
    %c0_2 = arith.constant 0 : index
    %1 = vector.load %arg4[%c0_1, %c0_2] : memref<8x384xf32, #tpu.memory_space<vmem>>, vector<8x384xf32>
    %cst = arith.constant dense<0.000000e+00> : vector<16x384xf32>
    %2 = tpu.matmul %0, %1, %cst {dimension_numbers = #tpu.dot_dimension_numbers<[1], [0], [0], [1], [0, 0, 1, 1], [], []>} : vector<16x8xf32>, vector<8x384xf32>, vector<16x384xf32> -> vector<16x384xf32>
    %c0_3 = arith.constant 0 : index
    %c0_4 = arith.constant 0 : index
    %3 = vector.load %arg5[%c0_3, %c0_4] : memref<1x384xf32, #tpu.memory_space<vmem>>, vector<1x384xf32>
    %4 = vector.broadcast %3 : vector<1x384xf32> to vector<16x384xf32>
    %5 = arith.addf %2, %4 : vector<16x384xf32>
    %6 = vector.extract_strided_slice %5 {offsets = [0, 0], sizes = [16, 128], strides = [1, 1]} : vector<16x384xf32> to vector<16x128xf32>
    %c0_5 = arith.constant 0 : index
    %c0_6 = arith.constant 0 : index
    %c0_7 = arith.constant 0 : index
    %7 = vector.load %arg12[%c0_5, %c0_6, %c0_7] : memref<3x16x128xf32, #tpu.memory_space<vmem>>, vector<1x16x128xf32>
    %8 = vector.shape_cast %7 : vector<1x16x128xf32> to vector<16x128xf32>
    %9 = vector.shape_cast %6 : vector<16x128xf32> to vector<1x16x128xf32>
    tpu.vector_store %arg12[%c0_5, %c0_6, %c0_7], %9 {strides = array<i32>} : memref<3x16x128xf32, #tpu.memory_space<vmem>>, vector<1x16x128xf32>,
    %10 = vector.extract_strided_slice %5 {offsets = [0, 128], sizes = [16, 128], strides = [1, 1]} : vector<16x384xf32> to vector<16x128xf32>
    %c1 = arith.constant 1 : index
    %c0_8 = arith.constant 0 : index
    %c0_9 = arith.constant 0 : index
    %11 = vector.load %arg12[%c1, %c0_8, %c0_9] : memref<3x16x128xf32, #tpu.memory_space<vmem>>, vector<1x16x128xf32>
    %12 = vector.shape_cast %11 : vector<1x16x128xf32> to vector<16x128xf32>
    %13 = vector.shape_cast %10 : vector<16x128xf32> to vector<1x16x128xf32>
    tpu.vector_store %arg12[%c1, %c0_8, %c0_9], %13 {strides = array<i32>} : memref<3x16x128xf32, #tpu.memory_space<vmem>>, vector<1x16x128xf32>,
    %14 = vector.extract_strided_slice %5 {offsets = [0, 256], sizes = [16, 128], strides = [1, 1]} : vector<16x384xf32> to vector<16x128xf32>
    %c2 = arith.constant 2 : index
    %c0_10 = arith.constant 0 : index
    %c0_11 = arith.constant 0 : index
    %15 = vector.load %arg12[%c2, %c0_10, %c0_11] : memref<3x16x128xf32, #tpu.memory_space<vmem>>, vector<1x16x128xf32>
    %16 = vector.shape_cast %15 : vector<1x16x128xf32> to vector<16x128xf32>
    %17 = vector.shape_cast %14 : vector<16x128xf32> to vector<1x16x128xf32>
    tpu.vector_store %arg12[%c2, %c0_10, %c0_11], %17 {strides = array<i32>} : memref<3x16x128xf32, #tpu.memory_space<vmem>>, vector<1x16x128xf32>,
    %c0_12 = arith.constant 0 : index
    %c0_13 = arith.constant 0 : index
    %18 = vector.load %arg1[%c0_12, %c0_13] : memref<16x1xi32, #tpu.memory_space<vmem>>, vector<16x1xi32>
    %c0_14 = arith.constant 0 : index
    %c0_15 = arith.constant 0 : index
    %19 = vector.load %arg2[%c0_14, %c0_15] : memref<1x16xi32, #tpu.memory_space<vmem>>, vector<1x16xi32>
    %20 = tpu.iota {dimensions = array<i32: 1>} : vector<16x8xi32>
    %21 = vector.broadcast %18 : vector<16x1xi32> to vector<16x8xi32>
    %22 = arith.cmpi eq, %20, %21 : vector<16x8xi32>
    %23 = arith.extui %22 : vector<16x8xi1> to vector<16x8xi32>
    %24 = arith.sitofp %23 : vector<16x8xi32> to vector<16x8xf32>
    %25 = tpu.iota {dimensions = array<i32: 0>} : vector<8x16xi32>
    %26 = vector.broadcast %19 : vector<1x16xi32> to vector<8x16xi32>
    %27 = arith.cmpi eq, %25, %26 : vector<8x16xi32>
    %28 = arith.extui %27 : vector<8x16xi1> to vector<8x16xi32>
    %29 = arith.sitofp %28 : vector<8x16xi32> to vector<8x16xf32>
    %c0_16 = arith.constant 0 : index
    %c0_17 = arith.constant 0 : index
    %30 = vector.load %arg0[%c0_16, %c0_17] : memref<8x128xf32, #tpu.memory_space<vmem>>, vector<8x128xf32>
    %c0_i32 = arith.constant 0 : i32
    %c3_i32 = arith.constant 3 : i32
    %31 = arith.addi %c0_i32, %c3_i32 : i32
    %c1_i32 = arith.constant 1 : i32
    %32 = scf.for %arg13 = %c0_i32 to %31 step %c1_i32 iter_args(%arg14 = %30) -> (vector<8x128xf32>)  : i32 {
      %34 = arith.index_cast %arg13 : i32 to index
      %c0_21 = arith.constant 0 : index
      %c0_22 = arith.constant 0 : index
      %35 = vector.load %arg12[%34, %c0_21, %c0_22] : memref<3x16x128xf32, #tpu.memory_space<vmem>>, vector<1x16x128xf32>
      %36 = vector.shape_cast %35 : vector<1x16x128xf32> to vector<16x128xf32>
      %cst_23 = arith.constant dense<0.000000e+00> : vector<16x128xf32>
      %37 = tpu.matmul %24, %arg14, %cst_23 {dimension_numbers = #tpu.dot_dimension_numbers<[1], [0], [0], [1], [0, 0, 1, 1], [], []>} : vector<16x8xf32>, vector<8x128xf32>, vector<16x128xf32> -> vector<16x128xf32>
      %38 = arith.addf %37, %36 : vector<16x128xf32>
      %cst_24 = arith.constant 0.000000e+00 : f32
      %39 = vector.broadcast %cst_24 : f32 to vector<16x128xf32>
      %40 = arith.maximumf %38, %39 : vector<16x128xf32>
      %cst_25 = arith.constant dense<0.000000e+00> : vector<8x128xf32>
      %41 = tpu.matmul %29, %40, %cst_25 {dimension_numbers = #tpu.dot_dimension_numbers<[1], [0], [0], [1], [0, 0, 1, 1], [], []>} : vector<8x16xf32>, vector<16x128xf32>, vector<8x128xf32> -> vector<8x128xf32>
      %42 = arith.index_cast %arg13 : i32 to index
      %43 = memref.load %arg6[%42] : memref<3xf32, #tpu.memory_space<smem>>
      %cst_26 = arith.constant 1.000000e+00 : f32
      %44 = arith.addf %cst_26, %43 : f32
      %45 = vector.broadcast %44 : f32 to vector<8x128xf32>
      %46 = arith.mulf %45, %arg14 : vector<8x128xf32>
      %47 = arith.addf %46, %41 : vector<8x128xf32>
      %48 = arith.index_cast %arg13 : i32 to index
      %c0_27 = arith.constant 0 : index
      %c0_28 = arith.constant 0 : index
      %49 = vector.load %arg7[%48, %c0_27, %c0_28] : memref<3x128x128xf32, #tpu.memory_space<vmem>>, vector<1x128x128xf32>
      %50 = vector.shape_cast %49 : vector<1x128x128xf32> to vector<128x128xf32>
      %cst_29 = arith.constant dense<0.000000e+00> : vector<8x128xf32>
      %51 = tpu.matmul %47, %50, %cst_29 {dimension_numbers = #tpu.dot_dimension_numbers<[1], [0], [0], [1], [0, 0, 1, 1], [], []>} : vector<8x128xf32>, vector<128x128xf32>, vector<8x128xf32> -> vector<8x128xf32>
      %52 = arith.index_cast %arg13 : i32 to index
      %c0_30 = arith.constant 0 : index
      %c0_31 = arith.constant 0 : index
      %53 = vector.load %arg8[%52, %c0_30, %c0_31] : memref<3x1x128xf32, #tpu.memory_space<vmem>>, vector<1x1x128xf32>
      %54 = vector.shape_cast %53 : vector<1x1x128xf32> to vector<1x128xf32>
      %55 = vector.broadcast %54 : vector<1x128xf32> to vector<8x128xf32>
      %56 = arith.addf %51, %55 : vector<8x128xf32>
      %cst_32 = arith.constant 0.000000e+00 : f32
      %57 = vector.broadcast %cst_32 : f32 to vector<8x128xf32>
      %58 = arith.maximumf %56, %57 : vector<8x128xf32>
      %59 = arith.index_cast %arg13 : i32 to index
      %c0_33 = arith.constant 0 : index
      %c0_34 = arith.constant 0 : index
      %60 = vector.load %arg9[%59, %c0_33, %c0_34] : memref<3x128x128xf32, #tpu.memory_space<vmem>>, vector<1x128x128xf32>
      %61 = vector.shape_cast %60 : vector<1x128x128xf32> to vector<128x128xf32>
      %cst_35 = arith.constant dense<0.000000e+00> : vector<8x128xf32>
      %62 = tpu.matmul %58, %61, %cst_35 {dimension_numbers = #tpu.dot_dimension_numbers<[1], [0], [0], [1], [0, 0, 1, 1], [], []>} : vector<8x128xf32>, vector<128x128xf32>, vector<8x128xf32> -> vector<8x128xf32>
      %63 = arith.index_cast %arg13 : i32 to index
      %c0_36 = arith.constant 0 : index
      %c0_37 = arith.constant 0 : index
      %64 = vector.load %arg10[%63, %c0_36, %c0_37] : memref<3x1x128xf32, #tpu.memory_space<vmem>>, vector<1x1x128xf32>
      %65 = vector.shape_cast %64 : vector<1x1x128xf32> to vector<1x128xf32>
      %66 = vector.broadcast %65 : vector<1x128xf32> to vector<8x128xf32>
      %67 = arith.addf %62, %66 : vector<8x128xf32>
      %c2_i32 = arith.constant 2 : i32
      %68 = arith.cmpi slt, %arg13, %c2_i32 : i32
      %cst_38 = arith.constant 0.000000e+00 : f32
      %69 = vector.broadcast %cst_38 : f32 to vector<8x128xf32>
      %70 = arith.maximumf %67, %69 : vector<8x128xf32>
      %71 = arith.select %68, %70, %67 : vector<8x128xf32>
      scf.yield %71 : vector<8x128xf32>
    }
    %c3_i32_18 = arith.constant 3 : i32
    %c0_19 = arith.constant 0 : index
    %c0_20 = arith.constant 0 : index
    %33 = vector.load %arg11[%c0_19, %c0_20] : memref<8x128xf32, #tpu.memory_space<vmem>>, vector<8x128xf32>
    tpu.vector_store %arg11[%c0_19, %c0_20], %32 {strides = array<i32>} : memref<8x128xf32, #tpu.memory_space<vmem>>, vector<8x128xf32>,
    return
  }
}

</mosaic_0001>

<llo_original>
// kernel: tpu_custom_call.1
$region0: #{tpu_custom_call.1}
  #allocation0 [shape = 'u32[]', space=smem, size = 0x4, offset = 0x4, fixed_abs, tag = 'smem constant byte address 0x4 - core index']
  #allocation1 [shape = 'u32[144,128]{1,0:T(1,128)}', space=vmem, size = 0x12000, scoped, tag = 'internal scratch']
  #allocation2 [shape = 'f32[3,16,128]{2,1,0:T(8,128)}', space=vmem, size = 0x6000, scoped, tag = 'scratch operand']
  %s0 = inlined_call_operand.vmem [shape: f32[8,128], index: 0, kind: input, shape index: {}]
  %s1 = inlined_call_operand.vmem [shape: s32[16,1], index: 1, kind: input, shape index: {}]
  %s2 = inlined_call_operand.vmem [shape: s32[1,16], index: 2, kind: input, shape index: {}]
  %s3 = inlined_call_operand.vmem [shape: f32[16,8], index: 3, kind: input, shape index: {}]
  %s4 = inlined_call_operand.vmem [shape: f32[8,384], index: 4, kind: input, shape index: {}]
  %s5 = inlined_call_operand.vmem [shape: f32[1,384], index: 5, kind: input, shape index: {}]
  %s6 = inlined_call_operand.vmem [shape: f32[3], index: 6, kind: input, shape index: {}]
  %s7 = inlined_call_operand.hbm [shape: f32[3,128,128], index: 7, kind: input, shape index: {}]
  %s8 = inlined_call_operand.vmem [shape: f32[3,1,128], index: 8, kind: input, shape index: {}]
  %s9 = inlined_call_operand.hbm [shape: f32[3,128,128], index: 9, kind: input, shape index: {}]
  %s10 = inlined_call_operand.vmem [shape: f32[3,1,128], index: 10, kind: input, shape index: {}]
  %s11 = inlined_call_operand.hbm [shape: f32[8,128], index: 11, kind: output, shape index: {}]
  %s12 = sld [smem:[#allocation0]]
  $region73: #{tpu_custom_call.1} parent=0
    _
  %s14 = ssub.s32 1, %s12
  %s15 = scalar_select 0, %s14, %s12
  $region1: #{tpu_custom_call.1} parent=0
    #allocation3 [shape = 'u8[512]{0}', space=smem, size = 0x200, scoped, tag = 'input window, operand 6, single buffered']
    #allocation4 [shape = 's32[1]{0}', space=sflag, size = 0x4, scoped, tag = 'scoped memory for tpu_custom_call.1']
    #allocation5 [shape = 's32[1]{0}', space=sflag, size = 0x4, scoped, tag = 'scoped memory for tpu_custom_call.1']
    #allocation6 [shape = 's32[1]{0}', space=sflag, size = 0x4, scoped, tag = 'scoped memory for tpu_custom_call.1']
    #allocation7 [shape = 'u8[196608]{0}', space=vmem, size = 0x30000, scoped, tag = 'input window, operand 7, single buffered']
    #allocation8 [shape = 'u8[196608]{0}', space=vmem, size = 0x30000, scoped, tag = 'input window, operand 9, single buffered']
    #allocation9 [shape = 's32[1]{0}', space=sflag, size = 0x4, scoped, tag = 'scoped memory for tpu_custom_call.1']
    #allocation10 [shape = 'u8[4096]{0}', space=vmem, size = 0x1000, scoped, tag = 'output window, operand 0, single buffered']
    %16 = vsyncpa [#allocation6], 0
    %17 = vsyncpa [#allocation4], 0
    %18 = vsyncpa [#allocation9], 0
    %19 = vsyncpa [#allocation5], 0
    // Predicated region
    $region2: #{tpu_custom_call.1} parent=1 // pred_check
      _
    $region3: #{tpu_custom_call.1} parent=1 // pred_check_branch
      %21 = sbr.rel (0) target = $region5
    $region4: #{tpu_custom_call.1} parent=1 // pred_region
      _
    $region5: #{tpu_custom_call.1} parent=1 // pred_fallthru
      _
    // Predicated region
    $region6: #{tpu_custom_call.1} parent=1 // pred_check
      _
    $region7: #{tpu_custom_call.1} parent=1 // pred_check_branch
      %23 = sbr.rel (0) target = $region9
    $region8: #{tpu_custom_call.1} parent=1 // pred_region
      _
    $region9: #{tpu_custom_call.1} parent=1 // pred_fallthru
      _
    // Predicated region
    $region10: #{tpu_custom_call.1} parent=1 // pred_check
      _
    $region11: #{tpu_custom_call.1} parent=1 // pred_check_branch
      %25 = sbr.rel (0) target = $region13
    $region12: #{tpu_custom_call.1} parent=1 // pred_region
      _
    $region13: #{tpu_custom_call.1} parent=1 // pred_fallthru
      _
    // Predicated region
    $region14: #{tpu_custom_call.1} parent=1 // pred_check
      _
    $region15: #{tpu_custom_call.1} parent=1 // pred_check_branch
      %27 = sbr.rel (0) target = $region17
    $region16: #{tpu_custom_call.1} parent=1 // pred_region
      _
    $region17: #{tpu_custom_call.1} parent=1 // pred_fallthru
      _
    // Predicated region
    $region18: #{tpu_custom_call.1} parent=1 // pred_check
      _
    $region19: #{tpu_custom_call.1} parent=1 // pred_check_branch
      %29 = sbr.rel (0) target = $region21
    $region20: #{tpu_custom_call.1} parent=1 // pred_region
      _
    $region21: #{tpu_custom_call.1} parent=1 // pred_fallthru
      _
    // Predicated region
    $region22: #{tpu_custom_call.1} parent=1 // pred_check
      _
    $region23: #{tpu_custom_call.1} parent=1 // pred_check_branch
      %31 = sbr.rel (0) target = $region25
    $region24: #{tpu_custom_call.1} parent=1 // pred_region
      _
    $region25: #{tpu_custom_call.1} parent=1 // pred_fallthru
      _
    // Predicated region
    $region26: #{tpu_custom_call.1} parent=1 // pred_check
      _
    $region27: #{tpu_custom_call.1} parent=1 // pred_check_branch
      %33 = sbr.rel (0) target = $region29
    $region28: #{tpu_custom_call.1} parent=1 // pred_region
      %s35 = ssub.s32 16, 16
      %36 = vsyncadd [#allocation6], %s35
      %s38 = sshll.u32 %s6, 4
      %s39 = int_to_ptr.vmem [resolvable:$true] %s38
      %41 = dma.vmem_to_smem %s39, 16, [#allocation3], [#allocation6]
    $region29: #{tpu_custom_call.1} parent=1 // pred_fallthru
      _
    // Predicated region
    $region30: #{tpu_custom_call.1} parent=1 // pred_check
      _
    $region31: #{tpu_custom_call.1} parent=1 // pred_check_branch
      %43 = sbr.rel (0) target = $region33
    $region32: #{tpu_custom_call.1} parent=1 // pred_region
      %s45 = ssub.s32 6144, 6144
      %46 = vsyncadd [#allocation4], %s45
      %s47 = sshll.u32 [#allocation7], 4
      %s48 = int_to_ptr.vmem [resolvable:$true] %s47
      %53 = dma.hbm_to_vmem [thread:$0]  %s7, 6144, %s48, [#allocation4], 128, 128, 8
    $region33: #{tpu_custom_call.1} parent=1 // pred_fallthru
      _
    // Predicated region
    $region34: #{tpu_custom_call.1} parent=1 // pred_check
      _
    $region35: #{tpu_custom_call.1} parent=1 // pred_check_branch
      %55 = sbr.rel (0) target = $region37
    $region36: #{tpu_custom_call.1} parent=1 // pred_region
      _
    $region37: #{tpu_custom_call.1} parent=1 // pred_fallthru
      _
    // Predicated region
    $region38: #{tpu_custom_call.1} parent=1 // pred_check
      _
    $region39: #{tpu_custom_call.1} parent=1 // pred_check_branch
      %57 = sbr.rel (0) target = $region41
    $region40: #{tpu_custom_call.1} parent=1 // pred_region
      %s59 = ssub.s32 6144, 6144
      %60 = vsyncadd [#allocation9], %s59
      %s61 = sshll.u32 [#allocation8], 4
      %s62 = int_to_ptr.vmem [resolvable:$true] %s61
      %67 = dma.hbm_to_vmem [thread:$0]  %s9, 6144, %s62, [#allocation9], 128, 128, 8
    $region41: #{tpu_custom_call.1} parent=1 // pred_fallthru
      _
    // Predicated region
    $region42: #{tpu_custom_call.1} parent=1 // pred_check
      _
    $region43: #{tpu_custom_call.1} parent=1 // pred_check_branch
      %69 = sbr.rel (0) target = $region45
    $region44: #{tpu_custom_call.1} parent=1 // pred_region
      _
    $region45: #{tpu_custom_call.1} parent=1 // pred_fallthru
      _
    // Predicated region
    $region46: #{tpu_custom_call.1} parent=1 // pred_check
      _
    $region47: #{tpu_custom_call.1} parent=1 // pred_check_branch
      %71 = sbr.rel (0) target = $region49
    $region48: #{tpu_custom_call.1} parent=1 // pred_region
      %72 = dma.done [#allocation6], 16
    $region49: #{tpu_custom_call.1} parent=1 // pred_fallthru
      _
    // Predicated region
    $region50: #{tpu_custom_call.1} parent=1 // pred_check
      _
    $region51: #{tpu_custom_call.1} parent=1 // pred_check_branch
      %74 = sbr.rel (0) target = $region53
    $region52: #{tpu_custom_call.1} parent=1 // pred_region
      %75 = dma.done [#allocation4], 6144
    $region53: #{tpu_custom_call.1} parent=1 // pred_fallthru
      _
    // Predicated region
    $region54: #{tpu_custom_call.1} parent=1 // pred_check
      _
    $region55: #{tpu_custom_call.1} parent=1 // pred_check_branch
      %77 = sbr.rel (0) target = $region57
    $region56: #{tpu_custom_call.1} parent=1 // pred_region
      %78 = dma.done [#allocation9], 6144
    $region57: #{tpu_custom_call.1} parent=1 // pred_fallthru
      _
    %79 = sfence
    %v80 = vld [vmem:[%s3] sm:$0xff]
    %v81 = vld [vmem:[%s3 + $0x8] sm:$0xff]
    %v82 = vld [vmem:[%s4] sm:$0xff]
    %v83 = vld [vmem:[%s4 + $0x8] sm:$0xff]
    %v84 = vld [vmem:[%s4 + $0x10] sm:$0xff]
    %v85 = vld [vmem:[%s5] sm:$0x7]
    %v87 = vlaneseq
    %v88 = vshrl.u32 %v87, 7
    %v89 = vsub.s32 0, %v88
    %v90 = vrot.slane %v85, %v89
    %v91 = vlaneseq
    %v92 = vshrl.u32 %v91, 7
    %v93 = vsub.s32 1, %v92
    %v94 = vrot.slane %v85, %v93
    %v95 = vlaneseq
    %v96 = vshrl.u32 %v95, 7
    %v97 = vsub.s32 2, %v96
    %v98 = vrot.slane %v85, %v97
    %vm102 = vcmask 64512
    %v104 = vsel %vm102, %v80, 0
    %v107 = vsel %vm102, %v81, 0
    %109 = vmatprep.subr.mxu0 %v83
    %110 = vmatpush1.msra.mxu0 %v82
    %111 = vmatprep.subr.mxu0 0.0
    %112 = vmatpush1.msra.mxu0 0.0
    %113 = vmatprep.subr.mxu0 0.0
    %114 = vmatpush1.msra.mxu0 0.0
    %115 = vmatprep.subr.mxu0 0.0
    %116 = vmatpush1.msra.mxu0 0.0
    %117 = vmatprep.subr.mxu0 0.0
    %118 = vmatpush1.msra.mxu0 0.0
    %119 = vmatprep.subr.mxu0 0.0
    %120 = vmatpush1.msra.mxu0 0.0
    %121 = vmatprep.subr.mxu0 0.0
    %122 = vmatpush1.msra.mxu0 0.0
    %123 = vmatprep.subr.mxu0 0.0
    %124 = vmatpush1.msra.mxu0 0.0
    %125 = vmatprep.subr.mxu0 0.0
    %126 = vmatpush1.msra.mxu0 0.0
    %127 = vmatprep.subr.mxu0 0.0
    %128 = vmatpush1.msra.mxu0 0.0
    %129 = vmatprep.subr.mxu0 0.0
    %130 = vmatpush1.msra.mxu0 0.0
    %131 = vmatprep.subr.mxu0 0.0
    %132 = vmatpush1.msra.mxu0 0.0
    %133 = vmatprep.subr.mxu0 0.0
    %134 = vmatpush1.msra.mxu0 0.0
    %135 = vmatprep.subr.mxu0 0.0
    %136 = vmatpush1.msra.mxu0 0.0
    %137 = vmatprep.subr.mxu0 0.0
    %138 = vmatpush1.msra.mxu0 0.0
    %139 = vmatprep.subr.mxu0 0.0
    %140 = vmatpush1.msra.mxu0 0.0
    %141 = vmatprep.subr.mxu0 0.0
    %142 = vmatpush1.msra.mxu0 0.0
    %143 = vmatprep.subr.mxu0 0.0
    %144 = vmatpush1.msra.mxu0 0.0
    %145 = vmatprep.subr.mxu0 0.0
    %146 = vmatpush1.msra.mxu0 0.0
    %147 = vmatprep.subr.mxu0 0.0
    %148 = vmatpush1.msra.mxu0 0.0
    %149 = vmatprep.subr.mxu0 0.0
    %150 = vmatpush1.msra.mxu0 0.0
    %151 = vmatprep.subr.mxu0 0.0
    %152 = vmatpush1.msra.mxu0 0.0
    %153 = vmatprep.subr.mxu0 0.0
    %154 = vmatpush1.msra.mxu0 0.0
    %155 = vmatprep.subr.mxu0 0.0
    %156 = vmatpush1.msra.mxu0 0.0
    %157 = vmatprep.subr.mxu0 0.0
    %158 = vmatpush1.msra.mxu0 0.0
    %159 = vmatprep.subr.mxu0 0.0
    %160 = vmatpush1.msra.mxu0 0.0
    %161 = vmatprep.subr.mxu0 0.0
    %162 = vmatpush1.msra.mxu0 0.0
    %163 = vmatprep.subr.mxu0 0.0
    %164 = vmatpush1.msra.mxu0 0.0
    %165 = vmatprep.subr.mxu0 0.0
    %166 = vmatpush1.msra.mxu0 0.0
    %167 = vmatprep.subr.mxu0 0.0
    %168 = vmatpush1.msra.mxu0 0.0
    %169 = vmatprep.subr.mxu0 0.0
    %170 = vmatpush1.msra.mxu0 0.0
    %171 = vmatprep.subr.mxu0 0.0
    %172 = vmatpush1.msra.mxu0 0.0
    %173 = vmatprep.mubr.f32.mxu0 0.0
    %174 = vmatmul.mubr.f32.gmra.mrb[0].mxu0 %v104
    %v175 = vpop.f32.mrb[0].mxu0
    %v176 = vadd.f32 %v90, %v175
    %v177 = vpop.f32.mrb[0].mxu0
    %v178 = vadd.f32 %v94, %v177
    %179 = vmatprep.mubr.f32.mxu0 0.0
    %180 = vmatmul.mubr.f32.gmra.mrb[0].mxu0 %v107
    %v181 = vpop.f32.mrb[0].mxu0
    %v182 = vadd.f32 %v90, %v181
    %v183 = vpop.f32.mrb[0].mxu0
    %v184 = vadd.f32 %v94, %v183
    %185 = vdwg.mxu0
    %186 = vmatprep.subr.mxu0 0.0
    %187 = vmatpush1.msra.mxu0 %v84
    %188 = vmatprep.subr.mxu0 0.0
    %189 = vmatpush1.msra.mxu0 0.0
    %190 = vmatprep.subr.mxu0 0.0
    %191 = vmatpush1.msra.mxu0 0.0
    %192 = vmatprep.subr.mxu0 0.0
    %193 = vmatpush1.msra.mxu0 0.0
    %194 = vmatprep.subr.mxu0 0.0
    %195 = vmatpush1.msra.mxu0 0.0
    %196 = vmatprep.subr.mxu0 0.0
    %197 = vmatpush1.msra.mxu0 0.0
    %198 = vmatprep.subr.mxu0 0.0
    %199 = vmatpush1.msra.mxu0 0.0
    %200 = vmatprep.subr.mxu0 0.0
    %201 = vmatpush1.msra.mxu0 0.0
    %202 = vmatprep.subr.mxu0 0.0
    %203 = vmatpush1.msra.mxu0 0.0
    %204 = vmatprep.subr.mxu0 0.0
    %205 = vmatpush1.msra.mxu0 0.0
    %206 = vmatprep.subr.mxu0 0.0
    %207 = vmatpush1.msra.mxu0 0.0
    %208 = vmatprep.subr.mxu0 0.0
    %209 = vmatpush1.msra.mxu0 0.0
    %210 = vmatprep.subr.mxu0 0.0
    %211 = vmatpush1.msra.mxu0 0.0
    %212 = vmatprep.subr.mxu0 0.0
    %213 = vmatpush1.msra.mxu0 0.0
    %214 = vmatprep.subr.mxu0 0.0
    %215 = vmatpush1.msra.mxu0 0.0
    %216 = vmatprep.subr.mxu0 0.0
    %217 = vmatpush1.msra.mxu0 0.0
    %218 = vmatprep.subr.mxu0 0.0
    %219 = vmatpush1.msra.mxu0 0.0
    %220 = vmatprep.subr.mxu0 0.0
    %221 = vmatpush1.msra.mxu0 0.0
    %222 = vmatprep.subr.mxu0 0.0
    %223 = vmatpush1.msra.mxu0 0.0
    %224 = vmatprep.subr.mxu0 0.0
    %225 = vmatpush1.msra.mxu0 0.0
    %226 = vmatprep.subr.mxu0 0.0
    %227 = vmatpush1.msra.mxu0 0.0
    %228 = vmatprep.subr.mxu0 0.0
    %229 = vmatpush1.msra.mxu0 0.0
    %230 = vmatprep.subr.mxu0 0.0
    %231 = vmatpush1.msra.mxu0 0.0
    %232 = vmatprep.subr.mxu0 0.0
    %233 = vmatpush1.msra.mxu0 0.0
    %234 = vmatprep.subr.mxu0 0.0
    %235 = vmatpush1.msra.mxu0 0.0
    %236 = vmatprep.subr.mxu0 0.0
    %237 = vmatpush1.msra.mxu0 0.0
    %238 = vmatprep.subr.mxu0 0.0
    %239 = vmatpush1.msra.mxu0 0.0
    %240 = vmatprep.subr.mxu0 0.0
    %241 = vmatpush1.msra.mxu0 0.0
    %242 = vmatprep.subr.mxu0 0.0
    %243 = vmatpush1.msra.mxu0 0.0
    %244 = vmatprep.subr.mxu0 0.0
    %245 = vmatpush1.msra.mxu0 0.0
    %246 = vmatprep.subr.mxu0 0.0
    %247 = vmatpush1.msra.mxu0 0.0
    %248 = vmatprep.subr.mxu0 0.0
    %249 = vmatpush1.msra.mxu0 0.0
    %250 = vmatprep.mubr.f32.mxu0 0.0
    %251 = vmatmul.mubr.f32.gmra.mrb[0].mxu0 %v104
    %v252 = vpop.f32.mrb[0].mxu0
    %v253 = vadd.f32 %v98, %v252
    %v254 = vpop.f32.mrb[0].mxu0
    %255 = vmatprep.mubr.f32.mxu0 0.0
    %256 = vmatmul.mubr.f32.gmra.mrb[0].mxu0 %v107
    %v257 = vpop.f32.mrb[0].mxu0
    %v258 = vadd.f32 %v98, %v257
    %v259 = vpop.f32.mrb[0].mxu0
    %260 = vdwg.mxu0
    %261 = vst [vmem:[#allocation2] sm:$0xff] %v176
    %262 = vst [vmem:[#allocation2 + $0x8] sm:$0xff] %v182
    %s263 = scalar_lea.vmem [#allocation2], 16
    %264 = vst [vmem:[%s263] sm:$0xff] %v178
    %265 = vst [vmem:[%s263 + $0x8] sm:$0xff] %v184
    %s266 = scalar_lea.vmem [#allocation2], 32
    %267 = vst [vmem:[%s266] sm:$0xff] %v253
    %268 = vst [vmem:[%s266 + $0x8] sm:$0xff] %v258
    %v269 = vld [vmem:[%s1] sm:$0xff]
    %v270 = vld [vmem:[%s1 + $0x8] sm:$0xff]
    %v271 = vld [vmem:[%s2] sm:$0x1]
    %v272 = vlaneseq
    %v273 = vand.u32 %v272, 127
    %274 = vset.pattern.permute.xlu0 0
    %275 = vperm.xlu0 %274, %v269
    %v276 = vpop.permute.xlu0 %275
    %277 = vset.pattern.permute.xlu0 0
    %278 = vperm.xlu0 %277, %v270
    %v279 = vpop.permute.xlu0 %278
    %vm280 = vcmp.eq.s32.totalorder %v273, %v276
    %vm281 = vcmp.eq.s32.totalorder %v273, %v279
    %v282 = vsel %vm280, 1, 0
    %v283 = vsel %vm281, 1, 0
    %v284 = vcvt.s32.f32 %v282
    %v285 = vcvt.s32.f32 %v283
    %v286 = vlaneseq
    %v287 = vshrl.u32 %v286, 7
    %v288 = vlaneseq
    %v289 = vshrl.u32 %v288, 7
    %v290 = vsub.s32 0, %v289
    %v291 = vrot.slane %v271, %v290
    %vm292 = vcmp.eq.s32.totalorder %v287, %v291
    %v293 = vsel %vm292, 1, 0
    %v294 = vcvt.s32.f32 %v293
    %v295 = vld [vmem:[%s0] sm:$0xff]
    loop: start=0, step=1, limit=3
    $region58: #{tpu_custom_call.1} parent=1 // loop_pre_header
      _
    $region59: #{tpu_custom_call.1} parent=1 // loop_header
      %s297 = sphi 0, %s301
      %p298 = scmp.ge.s32.totalorder %s297, 3
      %v302 = vphi %v295, %v666
    $region60: #{tpu_custom_call.1} parent=1 // loop_header_branch
      %300 = sbr.rel (%p298) target = $region64
    $region61: #{tpu_custom_call.1} parent=1 // loop_body
      %s303 = smul.u32 %s297, 16
      %s304 = scalar_lea.vmem [#allocation2], %s303
      %v305 = vld [vmem:[%s304] sm:$0xff]
      %v306 = vld [vmem:[%s304 + $0x8] sm:$0xff]
      %v308 = vsel %vm102, %v284, 0
      %v311 = vsel %vm102, %v285, 0
      %313 = vmatprep.subr.mxu0 0.0
      %314 = vmatpush1.msra.mxu0 %v302
      %315 = vmatprep.subr.mxu0 0.0
      %316 = vmatpush1.msra.mxu0 0.0
      %317 = vmatprep.subr.mxu0 0.0
      %318 = vmatpush1.msra.mxu0 0.0
      %319 = vmatprep.subr.mxu0 0.0
      %320 = vmatpush1.msra.mxu0 0.0
      %321 = vmatprep.subr.mxu0 0.0
      %322 = vmatpush1.msra.mxu0 0.0
      %323 = vmatprep.subr.mxu0 0.0
      %324 = vmatpush1.msra.mxu0 0.0
      %325 = vmatprep.subr.mxu0 0.0
      %326 = vmatpush1.msra.mxu0 0.0
      %327 = vmatprep.subr.mxu0 0.0
      %328 = vmatpush1.msra.mxu0 0.0
      %329 = vmatprep.subr.mxu0 0.0
      %330 = vmatpush1.msra.mxu0 0.0
      %331 = vmatprep.subr.mxu0 0.0
      %332 = vmatpush1.msra.mxu0 0.0
      %333 = vmatprep.subr.mxu0 0.0
      %334 = vmatpush1.msra.mxu0 0.0
      %335 = vmatprep.subr.mxu0 0.0
      %336 = vmatpush1.msra.mxu0 0.0
      %337 = vmatprep.subr.mxu0 0.0
      %338 = vmatpush1.msra.mxu0 0.0
      %339 = vmatprep.subr.mxu0 0.0
      %340 = vmatpush1.msra.mxu0 0.0
      %341 = vmatprep.subr.mxu0 0.0
      %342 = vmatpush1.msra.mxu0 0.0
      %343 = vmatprep.subr.mxu0 0.0
      %344 = vmatpush1.msra.mxu0 0.0
      %345 = vmatprep.subr.mxu0 0.0
      %346 = vmatpush1.msra.mxu0 0.0
      %347 = vmatprep.subr.mxu0 0.0
      %348 = vmatpush1.msra.mxu0 0.0
      %349 = vmatprep.subr.mxu0 0.0
      %350 = vmatpush1.msra.mxu0 0.0
      %351 = vmatprep.subr.mxu0 0.0
      %352 = vmatpush1.msra.mxu0 0.0
      %353 = vmatprep.subr.mxu0 0.0
      %354 = vmatpush1.msra.mxu0 0.0
      %355 = vmatprep.subr.mxu0 0.0
      %356 = vmatpush1.msra.mxu0 0.0
      %357 = vmatprep.subr.mxu0 0.0
      %358 = vmatpush1.msra.mxu0 0.0
      %359 = vmatprep.subr.mxu0 0.0
      %360 = vmatpush1.msra.mxu0 0.0
      %361 = vmatprep.subr.mxu0 0.0
      %362 = vmatpush1.msra.mxu0 0.0
      %363 = vmatprep.subr.mxu0 0.0
      %364 = vmatpush1.msra.mxu0 0.0
      %365 = vmatprep.subr.mxu0 0.0
      %366 = vmatpush1.msra.mxu0 0.0
      %367 = vmatprep.subr.mxu0 0.0
      %368 = vmatpush1.msra.mxu0 0.0
      %369 = vmatprep.subr.mxu0 0.0
      %370 = vmatpush1.msra.mxu0 0.0
      %371 = vmatprep.subr.mxu0 0.0
      %372 = vmatpush1.msra.mxu0 0.0
      %373 = vmatprep.subr.mxu0 0.0
      %374 = vmatpush1.msra.mxu0 0.0
      %375 = vmatprep.subr.mxu0 0.0
      %376 = vmatpush1.msra.mxu0 0.0
      %377 = vmatprep.mubr.f32.mxu0 0.0
      %378 = vmatmul.mubr.f32.gmra.mrb[0].mxu0 %v308
      %v379 = vpop.f32.mrb[0].mxu0
      %v380 = vadd.f32 %v305, %v379
      %v381 = vpop.f32.mrb[0].mxu0
      %382 = vmatprep.mubr.f32.mxu0 0.0
      %383 = vmatmul.mubr.f32.gmra.mrb[0].mxu0 %v311
      %v384 = vpop.f32.mrb[0].mxu0
      %v385 = vadd.f32 %v306, %v384
      %v386 = vpop.f32.mrb[0].mxu0
      %387 = vdwg.mxu0
      %v388 = vmax.f32 %v380, 0.0
      %v389 = vmax.f32 %v385, 0.0
      %vm390 = vcmask 130048
      %v392 = vsel %vm390, %v294, 0
      %394 = vmatprep.subr.mxu0 0.0
      %395 = vmatpush1.msra.mxu0 %v388
      %396 = vmatprep.subr.mxu0 0.0
      %397 = vmatpush1.msra.mxu0 %v389
      %398 = vmatprep.subr.mxu0 0.0
      %399 = vmatpush1.msra.mxu0 0.0
      %400 = vmatprep.subr.mxu0 0.0
      %401 = vmatpush1.msra.mxu0 0.0
      %402 = vmatprep.subr.mxu0 0.0
      %403 = vmatpush1.msra.mxu0 0.0
      %404 = vmatprep.subr.mxu0 0.0
      %405 = vmatpush1.msra.mxu0 0.0
      %406 = vmatprep.subr.mxu0 0.0
      %407 = vmatpush1.msra.mxu0 0.0
      %408 = vmatprep.subr.mxu0 0.0
      %409 = vmatpush1.msra.mxu0 0.0
      %410 = vmatprep.subr.mxu0 0.0
      %411 = vmatpush1.msra.mxu0 0.0
      %412 = vmatprep.subr.mxu0 0.0
      %413 = vmatpush1.msra.mxu0 0.0
      %414 = vmatprep.subr.mxu0 0.0
      %415 = vmatpush1.msra.mxu0 0.0
      %416 = vmatprep.subr.mxu0 0.0
      %417 = vmatpush1.msra.mxu0 0.0
      %418 = vmatprep.subr.mxu0 0.0
      %419 = vmatpush1.msra.mxu0 0.0
      %420 = vmatprep.subr.mxu0 0.0
      %421 = vmatpush1.msra.mxu0 0.0
      %422 = vmatprep.subr.mxu0 0.0
      %423 = vmatpush1.msra.mxu0 0.0
      %424 = vmatprep.subr.mxu0 0.0
      %425 = vmatpush1.msra.mxu0 0.0
      %426 = vmatprep.subr.mxu0 0.0
      %427 = vmatpush1.msra.mxu0 0.0
      %428 = vmatprep.subr.mxu0 0.0
      %429 = vmatpush1.msra.mxu0 0.0
      %430 = vmatprep.subr.mxu0 0.0
      %431 = vmatpush1.msra.mxu0 0.0
      %432 = vmatprep.subr.mxu0 0.0
      %433 = vmatpush1.msra.mxu0 0.0
      %434 = vmatprep.subr.mxu0 0.0
      %435 = vmatpush1.msra.mxu0 0.0
      %436 = vmatprep.subr.mxu0 0.0
      %437 = vmatpush1.msra.mxu0 0.0
      %438 = vmatprep.subr.mxu0 0.0
      %439 = vmatpush1.msra.mxu0 0.0
      %440 = vmatprep.subr.mxu0 0.0
      %441 = vmatpush1.msra.mxu0 0.0
      %442 = vmatprep.subr.mxu0 0.0
      %443 = vmatpush1.msra.mxu0 0.0
      %444 = vmatprep.subr.mxu0 0.0
      %445 = vmatpush1.msra.mxu0 0.0
      %446 = vmatprep.subr.mxu0 0.0
      %447 = vmatpush1.msra.mxu0 0.0
      %448 = vmatprep.subr.mxu0 0.0
      %449 = vmatpush1.msra.mxu0 0.0
      %450 = vmatprep.subr.mxu0 0.0
      %451 = vmatpush1.msra.mxu0 0.0
      %452 = vmatprep.subr.mxu0 0.0
      %453 = vmatpush1.msra.mxu0 0.0
      %454 = vmatprep.subr.mxu0 0.0
      %455 = vmatpush1.msra.mxu0 0.0
      %456 = vmatprep.subr.mxu0 0.0
      %457 = vmatpush1.msra.mxu0 0.0
      %458 = vmatprep.mubr.f32.mxu0 0.0
      %459 = vmatmul.mubr.f32.gmra.mrb[0].mxu0 %v392
      %v460 = vpop.f32.mrb[0].mxu0
      %v461 = vadd.f32 0.0, %v460
      %v462 = vpop.f32.mrb[0].mxu0
      %463 = vdwg.mxu0
      %s464 = sld [smem:[#allocation3 + %s297]]
      %s465 = sadd.f32 %s464, 1.0
      %v466 = vstv %s465
      %v467 = vmul.f32 %v466, %v302
      %v468 = vadd.f32 %v467, %v461
      %s469 = smul.u32 %s297, 128
      %s470 = scalar_lea.vmem [#allocation7], %s469
      %v471 = vld [vmem:[%s470] sm:$0xff]
      %v472 = vld [vmem:[%s470 + $0x8] sm:$0xff]
      %v473 = vld [vmem:[%s470 + $0x10] sm:$0xff]
      %v474 = vld [vmem:[%s470 + $0x18] sm:$0xff]
      %v475 = vld [vmem:[%s470 + $0x20] sm:$0xff]
      %v476 = vld [vmem:[%s470 + $0x28] sm:$0xff]
      %v477 = vld [vmem:[%s470 + $0x30] sm:$0xff]
      %v478 = vld [vmem:[%s470 + $0x38] sm:$0xff]
      %v479 = vld [vmem:[%s470 + $0x40] sm:$0xff]
      %v480 = vld [vmem:[%s470 + $0x48] sm:$0xff]
      %v481 = vld [vmem:[%s470 + $0x50] sm:$0xff]
      %v482 = vld [vmem:[%s470 + $0x58] sm:$0xff]
      %v483 = vld [vmem:[%s470 + $0x60] sm:$0xff]
      %v484 = vld [vmem:[%s470 + $0x68] sm:$0xff]
      %v485 = vld [vmem:[%s470 + $0x70] sm:$0xff]
      %v486 = vld [vmem:[%s470 + $0x78] sm:$0xff]
      %s487 = scalar_lea.vmem %s8, %s297
      %v488 = vld [vmem:[%s487] sm:$0x1]
      %v490 = vlaneseq
      %v491 = vshrl.u32 %v490, 7
      %v492 = vsub.s32 0, %v491
      %v493 = vrot.slane %v488, %v492
      %495 = vmatprep.subr.mxu0 0.0
      %496 = vmatpush1.msra.mxu0 %v471
      %497 = vmatprep.subr.mxu0 0.0
      %498 = vmatpush1.msra.mxu0 %v472
      %499 = vmatprep.subr.mxu0 0.0
      %500 = vmatpush1.msra.mxu0 %v473
      %501 = vmatprep.subr.mxu0 0.0
      %502 = vmatpush1.msra.mxu0 %v474
      %503 = vmatprep.subr.mxu0 0.0
      %504 = vmatpush1.msra.mxu0 %v475
      %505 = vmatprep.subr.mxu0 0.0
      %506 = vmatpush1.msra.mxu0 %v476
      %507 = vmatprep.subr.mxu0 0.0
      %508 = vmatpush1.msra.mxu0 %v477
      %509 = vmatprep.subr.mxu0 0.0
      %510 = vmatpush1.msra.mxu0 %v478
      %511 = vmatprep.subr.mxu0 0.0
      %512 = vmatpush1.msra.mxu0 %v479
      %513 = vmatprep.subr.mxu0 0.0
      %514 = vmatpush1.msra.mxu0 %v480
      %515 = vmatprep.subr.mxu0 0.0
      %516 = vmatpush1.msra.mxu0 %v481
      %517 = vmatprep.subr.mxu0 0.0
      %518 = vmatpush1.msra.mxu0 %v482
      %519 = vmatprep.subr.mxu0 0.0
      %520 = vmatpush1.msra.mxu0 %v483
      %521 = vmatprep.subr.mxu0 0.0
      %522 = vmatpush1.msra.mxu0 %v484
      %523 = vmatprep.subr.mxu0 0.0
      %524 = vmatpush1.msra.mxu0 %v485
      %525 = vmatprep.subr.mxu0 0.0
      %526 = vmatpush1.msra.mxu0 %v486
      %527 = vmatprep.subr.mxu0 0.0
      %528 = vmatpush1.msra.mxu0 0.0
      %529 = vmatprep.subr.mxu0 0.0
      %530 = vmatpush1.msra.mxu0 0.0
      %531 = vmatprep.subr.mxu0 0.0
      %532 = vmatpush1.msra.mxu0 0.0
      %533 = vmatprep.subr.mxu0 0.0
      %534 = vmatpush1.msra.mxu0 0.0
      %535 = vmatprep.subr.mxu0 0.0
      %536 = vmatpush1.msra.mxu0 0.0
      %537 = vmatprep.subr.mxu0 0.0
      %538 = vmatpush1.msra.mxu0 0.0
      %539 = vmatprep.subr.mxu0 0.0
      %540 = vmatpush1.msra.mxu0 0.0
      %541 = vmatprep.subr.mxu0 0.0
      %542 = vmatpush1.msra.mxu0 0.0
      %543 = vmatprep.subr.mxu0 0.0
      %544 = vmatpush1.msra.mxu0 0.0
      %545 = vmatprep.subr.mxu0 0.0
      %546 = vmatpush1.msra.mxu0 0.0
      %547 = vmatprep.subr.mxu0 0.0
      %548 = vmatpush1.msra.mxu0 0.0
      %549 = vmatprep.subr.mxu0 0.0
      %550 = vmatpush1.msra.mxu0 0.0
      %551 = vmatprep.subr.mxu0 0.0
      %552 = vmatpush1.msra.mxu0 0.0
      %553 = vmatprep.subr.mxu0 0.0
      %554 = vmatpush1.msra.mxu0 0.0
      %555 = vmatprep.subr.mxu0 0.0
      %556 = vmatpush1.msra.mxu0 0.0
      %557 = vmatprep.subr.mxu0 0.0
      %558 = vmatpush1.msra.mxu0 0.0
      %559 = vmatprep.mubr.f32.mxu0 0.0
      %560 = vmatmul.mubr.f32.gmra.mrb[0].mxu0 %v468
      %v561 = vpop.f32.mrb[0].mxu0
      %v562 = vadd.f32 %v493, %v561
      %v563 = vpop.f32.mrb[0].mxu0
      %564 = vdwg.mxu0
      %v565 = vmax.f32 %v562, 0.0
      %s566 = scalar_lea.vmem [#allocation8], %s469
      %v567 = vld [vmem:[%s566] sm:$0xff]
      %v568 = vld [vmem:[%s566 + $0x8] sm:$0xff]
      %v569 = vld [vmem:[%s566 + $0x10] sm:$0xff]
      %v570 = vld [vmem:[%s566 + $0x18] sm:$0xff]
      %v571 = vld [vmem:[%s566 + $0x20] sm:$0xff]
      %v572 = vld [vmem:[%s566 + $0x28] sm:$0xff]
      %v573 = vld [vmem:[%s566 + $0x30] sm:$0xff]
      %v574 = vld [vmem:[%s566 + $0x38] sm:$0xff]
      %v575 = vld [vmem:[%s566 + $0x40] sm:$0xff]
      %v576 = vld [vmem:[%s566 + $0x48] sm:$0xff]
      %v577 = vld [vmem:[%s566 + $0x50] sm:$0xff]
      %v578 = vld [vmem:[%s566 + $0x58] sm:$0xff]
      %v579 = vld [vmem:[%s566 + $0x60] sm:$0xff]
      %v580 = vld [vmem:[%s566 + $0x68] sm:$0xff]
      %v581 = vld [vmem:[%s566 + $0x70] sm:$0xff]
      %v582 = vld [vmem:[%s566 + $0x78] sm:$0xff]
      %s583 = scalar_lea.vmem %s10, %s297
      %v584 = vld [vmem:[%s583] sm:$0x1]
      %v586 = vlaneseq
      %v587 = vshrl.u32 %v586, 7
      %v588 = vsub.s32 0, %v587
      %v589 = vrot.slane %v584, %v588
      %591 = vmatprep.subr.mxu0 0.0
      %592 = vmatpush1.msra.mxu0 %v567
      %593 = vmatprep.subr.mxu0 0.0
      %594 = vmatpush1.msra.mxu0 %v568
      %595 = vmatprep.subr.mxu0 0.0
      %596 = vmatpush1.msra.mxu0 %v569
      %597 = vmatprep.subr.mxu0 0.0
      %598 = vmatpush1.msra.mxu0 %v570
      %599 = vmatprep.subr.mxu0 0.0
      %600 = vmatpush1.msra.mxu0 %v571
      %601 = vmatprep.subr.mxu0 0.0
      %602 = vmatpush1.msra.mxu0 %v572
      %603 = vmatprep.subr.mxu0 0.0
      %604 = vmatpush1.msra.mxu0 %v573
      %605 = vmatprep.subr.mxu0 0.0
      %606 = vmatpush1.msra.mxu0 %v574
      %607 = vmatprep.subr.mxu0 0.0
      %608 = vmatpush1.msra.mxu0 %v575
      %609 = vmatprep.subr.mxu0 0.0
      %610 = vmatpush1.msra.mxu0 %v576
      %611 = vmatprep.subr.mxu0 0.0
      %612 = vmatpush1.msra.mxu0 %v577
      %613 = vmatprep.subr.mxu0 0.0
      %614 = vmatpush1.msra.mxu0 %v578
      %615 = vmatprep.subr.mxu0 0.0
      %616 = vmatpush1.msra.mxu0 %v579
      %617 = vmatprep.subr.mxu0 0.0
      %618 = vmatpush1.msra.mxu0 %v580
      %619 = vmatprep.subr.mxu0 0.0
      %620 = vmatpush1.msra.mxu0 %v581
      %621 = vmatprep.subr.mxu0 0.0
      %622 = vmatpush1.msra.mxu0 %v582
      %623 = vmatprep.subr.mxu0 0.0
      %624 = vmatpush1.msra.mxu0 0.0
      %625 = vmatprep.subr.mxu0 0.0
      %626 = vmatpush1.msra.mxu0 0.0
      %627 = vmatprep.subr.mxu0 0.0
      %628 = vmatpush1.msra.mxu0 0.0
      %629 = vmatprep.subr.mxu0 0.0
      %630 = vmatpush1.msra.mxu0 0.0
      %631 = vmatprep.subr.mxu0 0.0
      %632 = vmatpush1.msra.mxu0 0.0
      %633 = vmatprep.subr.mxu0 0.0
      %634 = vmatpush1.msra.mxu0 0.0
      %635 = vmatprep.subr.mxu0 0.0
      %636 = vmatpush1.msra.mxu0 0.0
      %637 = vmatprep.subr.mxu0 0.0
      %638 = vmatpush1.msra.mxu0 0.0
      %639 = vmatprep.subr.mxu0 0.0
      %640 = vmatpush1.msra.mxu0 0.0
      %641 = vmatprep.subr.mxu0 0.0
      %642 = vmatpush1.msra.mxu0 0.0
      %643 = vmatprep.subr.mxu0 0.0
      %644 = vmatpush1.msra.mxu0 0.0
      %645 = vmatprep.subr.mxu0 0.0
      %646 = vmatpush1.msra.mxu0 0.0
      %647 = vmatprep.subr.mxu0 0.0
      %648 = vmatpush1.msra.mxu0 0.0
      %649 = vmatprep.subr.mxu0 0.0
      %650 = vmatpush1.msra.mxu0 0.0
      %651 = vmatprep.subr.mxu0 0.0
      %652 = vmatpush1.msra.mxu0 0.0
      %653 = vmatprep.subr.mxu0 0.0
      %654 = vmatpush1.msra.mxu0 0.0
      %655 = vmatprep.mubr.f32.mxu0 0.0
      %656 = vmatmul.mubr.f32.gmra.mrb[0].mxu0 %v565
      %v657 = vpop.f32.mrb[0].mxu0
      %v658 = vadd.f32 %v589, %v657
      %v659 = vpop.f32.mrb[0].mxu0
      %660 = vdwg.mxu0
      %p661 = scmp.lt.s32.totalorder %s297, 2
      %v662 = vmax.f32 %v658, 0.0
      %s663 = scalar_select %p661, 1, 0
      %v664 = vstv %s663
      %vm665 = vcmp.eq.s32.totalorder %v664, 1
      %v666 = vsel %vm665, %v662, %v658
    $region62: #{tpu_custom_call.1} parent=1 // loop_footer
      %s301 = sadd.s32 1, %s297
    $region63: #{tpu_custom_call.1} parent=1 // loop_footer_branch
      %296 = sbr.rel target = $region59
    $region64: #{tpu_custom_call.1} parent=1 // loop_exit
      _
    %667 = vst [vmem:[#allocation10] sm:$0xff] %v302
    // Predicated region
    $region65: #{tpu_custom_call.1} parent=1 // pred_check
      _
    $region66: #{tpu_custom_call.1} parent=1 // pred_check_branch
      %669 = sbr.rel (0) target = $region68
    $region67: #{tpu_custom_call.1} parent=1 // pred_region
      %s671 = ssub.s32 128, 128
      %672 = vsyncadd [#allocation5], %s671
      %s674 = sshll.u32 [#allocation10], 4
      %s675 = int_to_ptr.vmem [resolvable:$true] %s674
      %677 = dma.vmem_to_hbm [thread:$0]  %s675, 128, %s11, [#allocation5]
    $region68: #{tpu_custom_call.1} parent=1 // pred_fallthru
      _
    // Predicated region
    $region69: #{tpu_custom_call.1} parent=1 // pred_check
      _
    $region70: #{tpu_custom_call.1} parent=1 // pred_check_branch
      %679 = sbr.rel (0) target = $region72
    $region71: #{tpu_custom_call.1} parent=1 // pred_region
      %680 = dma.done [#allocation5], 128
    $region72: #{tpu_custom_call.1} parent=1 // pred_fallthru
      _
    %681 = vsyncpa [#allocation4], 1
    %682 = vsyncpa [#allocation9], 1
    %683 = vsyncpa [#allocation5], 1
    %684 = vsyncpa [#allocation6], 1

</llo_original>
